<compile_context>
chip_gen: v6e
topology: v6e:2x2x1
jax: 0.10.0
libtpu: 0.0.40
codegen_flags: <defaults>
</compile_context>

<pallas_src>
import functools
import math

import jax
import jax.numpy as jnp
from jax.experimental import pallas as pl
from jax.experimental.pallas import tpu as pltpu


def mhg_kernel(x_ref, w_ref, b_ref, o_ref, *, num_heads, cin, compute_dtype):
    """One (batch, pixel-tile) block per grid step.

    x_ref : (1, Cin, TN)   input pixels (channels-major, lane-dense spatial tile)
    w_ref : (Cout, Cin)    1x1-conv weight (pre-cast to compute_dtype in wrapper)
    b_ref : (Cout, 1)      conv bias (f32)
    o_ref : (1, Cin, TN)   gated output tile
    """
    x = x_ref[0]                                          # (Cin, TN)
    # Pointwise conv == channel matmul on the MXU, bf16 operands, f32 accumulate.
    y = jnp.dot(w_ref[...].astype(compute_dtype),
                x.astype(compute_dtype),
                preferred_element_type=jnp.float32)       # (Cout, TN) f32
    y = y + b_ref[...]                                    # bias broadcast over lanes

    # Per-head gating product + head sum, all in f32 on the VPU (v5e-safe).
    acc = y[0:cin, :] * y[cin:2 * cin, :]
    for h in range(1, num_heads):                         # num_heads is small & static
        a = y[(2 * h) * cin:(2 * h + 1) * cin, :]
        g = y[(2 * h + 1) * cin:(2 * h + 2) * cin, :]
        acc = acc + a * g
    o_ref[0] = acc.astype(o_ref.dtype)


def _pick_pixel_tile(n_pix, max_tile=2048):
    """Largest multiple of 128 that divides n_pix (capped), else the full extent."""
    best = None
    t = 128
    while t <= min(n_pix, max_tile):
        if n_pix % t == 0:
            best = t
        t += 128
    return best if best is not None else n_pix


def mhg_forward(x, weight, bias, *, num_heads=1, groups=1, dwconv_usage=False,
                compute_dtype=jnp.bfloat16, tile_pixels=None):
    """MHG.forward for the default configuration (groups=1, dwconv_usage=False)."""
    # TODO(synk): grouped 1x1 conv (groups > 1) not implemented (module default is 1).
    assert groups == 1
    # TODO(synk): dwconv_usage=True (3x3 depthwise preprocessing) not implemented
    #             (module default is False -> nn.Identity).
    assert not dwconv_usage

    B, Cin, H, W = x.shape
    Cout = Cin * 2 * num_heads
    HW = H * W

    TN = tile_pixels if tile_pixels is not None else _pick_pixel_tile(HW)
    assert HW % TN == 0

    xf = x.reshape(B, Cin, HW)
    w2 = weight.reshape(Cout, Cin).astype(compute_dtype)   # accepts (Cout,Cin,1,1) too
    b2 = bias.reshape(Cout, 1).astype(jnp.float32)

    out = pl.pallas_call(
        functools.partial(mhg_kernel, num_heads=num_heads, cin=Cin,
                          compute_dtype=compute_dtype),
        out_shape=jax.ShapeDtypeStruct((B, Cin, HW), x.dtype),
        grid_spec=pltpu.PrefetchScalarGridSpec(
            num_scalar_prefetch=0,
            grid=(B, HW // TN),
            in_specs=[
                pl.BlockSpec((1, Cin, TN), lambda b, s: (b, 0, s)),
                pl.BlockSpec((Cout, Cin), lambda b, s: (0, 0)),   # weight resident
                pl.BlockSpec((Cout, 1), lambda b, s: (0, 0)),     # bias resident
            ],
            out_specs=pl.BlockSpec((1, Cin, TN), lambda b, s: (b, 0, s)),
        ),
        compiler_params=pltpu.CompilerParams(
            dimension_semantics=("parallel", "parallel")),
    )(xf, w2, b2)
    return out.reshape(B, Cin, H, W)


if __name__ == "__main__":
    # Small shapes consistent with the module: in_channels=32, num_heads=2 -> Cout=128.
    B, Cin, H, W = 2, 32, 16, 16
    num_heads = 2
    Cout = Cin * 2 * num_heads

    key = jax.random.PRNGKey(0)
    key, kw, kb, kx = jax.random.split(key, 4)
    k = 1.0 / math.sqrt(Cin)   # PyTorch Conv2d default init bound (fan_in = Cin * 1 * 1)
    weight = jax.random.uniform(kw, (Cout, Cin, 1, 1), jnp.float32, -k, k)
    bias = jax.random.uniform(kb, (Cout,), jnp.float32, -k, k)
    x = jax.random.normal(kx, (B, Cin, H, W), jnp.float32)

    fwd = jax.jit(functools.partial(mhg_forward, num_heads=num_heads))
    out = fwd(x, weight, bias)
    out = jax.block_until_ready(out)
    assert out.shape == (B, Cin, H, W), out.shape
    assert out.dtype == x.dtype, out.dtype

    # Pure-JAX f32 reference of the PyTorch forward.
    wf = weight.reshape(Cout, Cin)
    y = jnp.einsum('oc,bchw->bohw', wf, x) + bias[None, :, None, None]
    ref = jnp.zeros((B, Cin, H, W), jnp.float32)
    for h in range(num_heads):
        a = y[:, (2 * h) * Cin:(2 * h + 1) * Cin]
        g = y[:, (2 * h + 1) * Cin:(2 * h + 2) * Cin]
        ref = ref + a * g

    # bf16 MXU operands with f32 accumulation -> ~1e-3-level relative error vs f32 ref.
    assert jnp.allclose(out, ref, rtol=2e-2, atol=2e-2), \
        float(jnp.max(jnp.abs(out - ref)))
    print("KERNEL_OK")
</pallas_src>

<mosaic_0001>
module attributes {stable_mosaic.version = 11 : i64} {
  func.func @mhg_kernel(%arg0: i32, %arg1: i32, %arg2: memref<1x32x256xf32, #tpu.memory_space<vmem>>, %arg3: memref<128x32xbf16, #tpu.memory_space<vmem>>, %arg4: memref<128x1xf32, #tpu.memory_space<vmem>>, %arg5: memref<1x32x256xf32, #tpu.memory_space<vmem>>) attributes {dimension_semantics = [#tpu.dimension_semantics<parallel>, #tpu.dimension_semantics<parallel>], iteration_bounds = array<i64: 2, 1>, scalar_prefetch = 0 : i64, scratch_operands = 0 : i64, tpu.core_type = #tpu.core_type<tc>, window_params = [{transform_indices = @transform_0, window_bounds = array<i64: 1, 32, 256>}, {pipeline_mode = #tpu.pipeline_mode<synchronous>, transform_indices = @transform_1, window_bounds = array<i64: 128, 32>}, {pipeline_mode = #tpu.pipeline_mode<synchronous>, transform_indices = @transform_2, window_bounds = array<i64: 128, 1>}, {transform_indices = @transform_3, window_bounds = array<i64: 1, 32, 256>}]} {
    %c0 = arith.constant 0 : index
    %c0_0 = arith.constant 0 : index
    %c0_1 = arith.constant 0 : index
    %0 = vector.load %arg2[%c0, %c0_0, %c0_1] : memref<1x32x256xf32, #tpu.memory_space<vmem>>, vector<1x32x256xf32>
    %1 = vector.shape_cast %0 : vector<1x32x256xf32> to vector<32x256xf32>
    %c0_2 = arith.constant 0 : index
    %c0_3 = arith.constant 0 : index
    %2 = vector.load %arg3[%c0_2, %c0_3] : memref<128x32xbf16, #tpu.memory_space<vmem>>, vector<128x32xbf16>
    %3 = arith.truncf %1 : vector<32x256xf32> to vector<32x256xbf16>
    %cst = arith.constant dense<0.000000e+00> : vector<128x256xf32>
    %4 = tpu.matmul %2, %3, %cst {dimension_numbers = #tpu.dot_dimension_numbers<[1], [0], [0], [1], [0, 0, 1, 1], [], []>} : vector<128x32xbf16>, vector<32x256xbf16>, vector<128x256xf32> -> vector<128x256xf32>
    %c0_4 = arith.constant 0 : index
    %c0_5 = arith.constant 0 : index
    %5 = vector.load %arg4[%c0_4, %c0_5] : memref<128x1xf32, #tpu.memory_space<vmem>>, vector<128x1xf32>
    %6 = vector.broadcast %5 : vector<128x1xf32> to vector<128x256xf32>
    %7 = arith.addf %4, %6 : vector<128x256xf32>
    %8 = vector.extract_strided_slice %7 {offsets = [0, 0], sizes = [32, 256], strides = [1, 1]} : vector<128x256xf32> to vector<32x256xf32>
    %9 = vector.extract_strided_slice %7 {offsets = [32, 0], sizes = [32, 256], strides = [1, 1]} : vector<128x256xf32> to vector<32x256xf32>
    %10 = arith.mulf %8, %9 : vector<32x256xf32>
    %11 = vector.extract_strided_slice %7 {offsets = [64, 0], sizes = [32, 256], strides = [1, 1]} : vector<128x256xf32> to vector<32x256xf32>
    %12 = vector.extract_strided_slice %7 {offsets = [96, 0], sizes = [32, 256], strides = [1, 1]} : vector<128x256xf32> to vector<32x256xf32>
    %13 = arith.mulf %11, %12 : vector<32x256xf32>
    %14 = arith.addf %10, %13 : vector<32x256xf32>
    %c0_6 = arith.constant 0 : index
    %c0_7 = arith.constant 0 : index
    %c0_8 = arith.constant 0 : index
    %15 = vector.load %arg5[%c0_6, %c0_7, %c0_8] : memref<1x32x256xf32, #tpu.memory_space<vmem>>, vector<1x32x256xf32>
    %16 = vector.shape_cast %15 : vector<1x32x256xf32> to vector<32x256xf32>
    %17 = vector.shape_cast %14 : vector<32x256xf32> to vector<1x32x256xf32>
    tpu.vector_store %arg5[%c0_6, %c0_7, %c0_8], %17 {strides = array<i32>} : memref<1x32x256xf32, #tpu.memory_space<vmem>>, vector<1x32x256xf32>,
    return
  }
  func.func @transform_0(%arg0: i32, %arg1: i32) -> (i32, i32, i32) {
    %c0_i32 = arith.constant 0 : i32
    %c0_i32_0 = arith.constant 0 : i32
    return %arg0, %c0_i32, %arg1 : i32, i32, i32
  }
  func.func @transform_1(%arg0: i32, %arg1: i32) -> (i32, i32) {
    %c0_i32 = arith.constant 0 : i32
    %c0_i32_0 = arith.constant 0 : i32
    %c0_i32_1 = arith.constant 0 : i32
    return %c0_i32, %c0_i32_0 : i32, i32
  }
  func.func @transform_2(%arg0: i32, %arg1: i32) -> (i32, i32) {
    %c0_i32 = arith.constant 0 : i32
    %c0_i32_0 = arith.constant 0 : i32
    %c0_i32_1 = arith.constant 0 : i32
    return %c0_i32, %c0_i32_0 : i32, i32
  }
  func.func @transform_3(%arg0: i32, %arg1: i32) -> (i32, i32, i32) {
    %c0_i32 = arith.constant 0 : i32
    %c0_i32_0 = arith.constant 0 : i32
    return %arg0, %c0_i32, %arg1 : i32, i32, i32
  }
}

</mosaic_0001>

<llo_original>
// kernel: mhg_forward.1
$region0: #{mhg_forward.1}
  #allocation0 [shape = 'u32[]', space=smem, size = 0x4, offset = 0x4, fixed_abs, tag = 'smem constant byte address 0x4 - core index']
  #allocation1 [shape = 'u32[144,128]{1,0:T(1,128)}', space=vmem, size = 0x12000, scoped, tag = 'internal scratch']
  %s0 = inlined_call_operand.vmem [shape: f32[2,32,256], index: 0, kind: input, shape index: {}]
  %s1 = inlined_call_operand.vmem [shape: bf16[128,32], index: 1, kind: input, shape index: {}]
  %s2 = inlined_call_operand.vmem [shape: f32[128,1], index: 2, kind: input, shape index: {}]
  %s3 = inlined_call_operand.vmem [shape: f32[2,32,256], index: 3, kind: output, shape index: {}]
  %s4 = sld [smem:[#allocation0]]
  $region45: #{mhg_forward.1} parent=0
    _
  %s6 = ssub.s32 1, %s4
  %s7 = scalar_select 0, %s6, %s4
  loop: start=0, step=1, limit=4
  $region2: #{mhg_forward.1} parent=0 // loop_pre_header
    _
  $region3: #{mhg_forward.1} parent=0 // loop_header
    %s9 = sphi 0, %s13
    %p10 = scmp.ge.s32.totalorder %s9, 4
    %s16 = sphi 0, %s28
    %s17 = sphi 0, %s24
    %s18 = sphi 0, %s16
    %s19 = sphi 0, %s17
    %s20 = sphi 0, %s18
    %s21 = sphi 0, %s19
    %s33 = sphi 0, %s35
    %s36 = sphi 0, %s33
    %s37 = sphi 0, %s36
    %s53 = sphi 0, %s37
    %s57 = sphi 0, %s57
    %s59 = sphi 0, %s57
    %s60 = sphi 0, %s59
    %s74 = sphi 0, %s60
    %s78 = sphi 0, %s78
    %s80 = sphi 0, %s78
    %s81 = sphi 0, %s80
    %s95 = sphi 0, %s81
    %s103 = sphi 0, %s105
    %s106 = sphi 0, %s103
    %s107 = sphi 0, %s106
    %s123 = sphi 0, %s107
  $region4: #{mhg_forward.1} parent=0 // loop_header_branch
    %12 = sbr.rel (%p10) target = $region8
  $region5: #{mhg_forward.1} parent=0 // loop_body
    %s14 = ssub.s32 %s9, 1
    %s15 = ssub.s32 %s9, 2
    %s22 = sadd.s32 1, %s17
    %p23 = scmp.ge.s32.totalorder %s22, 1
    %s24 = scalar_select %p23, 0, %s22
    %s25 = sadd.s32 1, %s16
    %s26 = scalar_select %p23, %s25, %s16
    %p27 = scmp.ge.s32.totalorder %s26, 2
    %s28 = scalar_select %p27, 0, %s26
    %s29 = ssub.s32 %s16, %s28
    %s30 = ssub.s32 %s17, %s24
    %s31 = sor.u32 %s29, %s30
    %p32 = scmp.eq.s32.totalorder %s31, 0
    %s34 = sadd.s32 %s33, 1
    %s35 = scalar_select %p32, %s33, %s34
    %p38 = pneg %p32
    %p39 = scmp.eq.s32.totalorder %s9, 1
    %p40 = por %p38, %p39
    %p41 = scmp.ne.s32.totalorder %s33, %s36
    %p42 = scmp.eq.s32.totalorder %s9, 0
    %p43 = por %p41, %p42
    %p44 = scmp.ne.s32.totalorder %s33, %s36
    %p45 = scmp.eq.s32.totalorder %s14, 1
    %p46 = por %p44, %p45
    %p47 = scmp.ne.s32.totalorder %s36, %s37
    %p48 = scmp.eq.s32.totalorder %s14, 0
    %p49 = por %p47, %p48
    %p50 = scmp.ne.s32.totalorder %s36, %s37
    %p51 = scmp.eq.s32.totalorder %s15, 1
    %p52 = por %p50, %p51
    %p54 = scmp.ne.s32.totalorder %s37, %s53
    %p55 = scmp.eq.s32.totalorder %s15, 0
    %p56 = por %p54, %p55
    %s58 = sadd.s32 %s57, 1
    %p61 = scmp.eq.s32.totalorder %s9, 1
    %p62 = scmp.ne.s32.totalorder %s57, %s59
    %p63 = scmp.eq.s32.totalorder %s9, 0
    %p64 = por %p62, %p63
    %p65 = scmp.ne.s32.totalorder %s57, %s59
    %p66 = scmp.eq.s32.totalorder %s14, 1
    %p67 = por %p65, %p66
    %p68 = scmp.ne.s32.totalorder %s59, %s60
    %p69 = scmp.eq.s32.totalorder %s14, 0
    %p70 = por %p68, %p69
    %p71 = scmp.ne.s32.totalorder %s59, %s60
    %p72 = scmp.eq.s32.totalorder %s15, 1
    %p73 = por %p71, %p72
    %p75 = scmp.ne.s32.totalorder %s60, %s74
    %p76 = scmp.eq.s32.totalorder %s15, 0
    %p77 = por %p75, %p76
    %s79 = sadd.s32 %s78, 1
    %p82 = scmp.eq.s32.totalorder %s9, 1
    %p83 = scmp.ne.s32.totalorder %s78, %s80
    %p84 = scmp.eq.s32.totalorder %s9, 0
    %p85 = por %p83, %p84
    %p86 = scmp.ne.s32.totalorder %s78, %s80
    %p87 = scmp.eq.s32.totalorder %s14, 1
    %p88 = por %p86, %p87
    %p89 = scmp.ne.s32.totalorder %s80, %s81
    %p90 = scmp.eq.s32.totalorder %s14, 0
    %p91 = por %p89, %p90
    %p92 = scmp.ne.s32.totalorder %s80, %s81
    %p93 = scmp.eq.s32.totalorder %s15, 1
    %p94 = por %p92, %p93
    %p96 = scmp.ne.s32.totalorder %s81, %s95
    %p97 = scmp.eq.s32.totalorder %s15, 0
    %p98 = por %p96, %p97
    %s99 = ssub.s32 %s16, %s28
    %s100 = ssub.s32 %s17, %s24
    %s101 = sor.u32 %s99, %s100
    %p102 = scmp.eq.s32.totalorder %s101, 0
    %s104 = sadd.s32 %s103, 1
    %s105 = scalar_select %p102, %s103, %s104
    %p108 = pneg %p102
    %p109 = scmp.eq.s32.totalorder %s9, 1
    %p110 = por %p108, %p109
    %p111 = scmp.ne.s32.totalorder %s103, %s106
    %p112 = scmp.eq.s32.totalorder %s9, 0
    %p113 = por %p111, %p112
    %p114 = scmp.ne.s32.totalorder %s103, %s106
    %p115 = scmp.eq.s32.totalorder %s14, 1
    %p116 = por %p114, %p115
    %p117 = scmp.ne.s32.totalorder %s106, %s107
    %p118 = scmp.eq.s32.totalorder %s14, 0
    %p119 = por %p117, %p118
    %p120 = scmp.ne.s32.totalorder %s106, %s107
    %p121 = scmp.eq.s32.totalorder %s15, 1
    %p122 = por %p120, %p121
    %p124 = scmp.ne.s32.totalorder %s107, %s123
    %p125 = scmp.eq.s32.totalorder %s15, 0
    %p126 = por %p124, %p125
    %p127 = scmp.le.s32.totalorder 1, %s9
    %p128 = scmp.lt.s32.totalorder %s9, 3
    %p129 = pnand %p127, %p128
    %p130 = pneg %p129
    // Predicated region
    $region9: #{mhg_forward.1} parent=5 // pred_check
      _
    $region10: #{mhg_forward.1} parent=5 // pred_check_branch
      %132 = sbr.rel (%p129) target = $region12
    $region11: #{mhg_forward.1} parent=5 // pred_region
      %s133 = ssub.s32 %s9, 1
      // Predicated region
      $region13: #{mhg_forward.1} parent=11 // pred_check
        %p134 = pneg %p70
      $region14: #{mhg_forward.1} parent=11 // pred_check_branch
        %136 = sbr.rel (%p134) target = $region16
      $region15: #{mhg_forward.1} parent=11 // pred_region
        _
      $region16: #{mhg_forward.1} parent=11 // pred_fallthru
        _
      // Predicated region
      $region17: #{mhg_forward.1} parent=11 // pred_check
        %p137 = pneg %p91
      $region18: #{mhg_forward.1} parent=11 // pred_check_branch
        %139 = sbr.rel (%p137) target = $region20
      $region19: #{mhg_forward.1} parent=11 // pred_region
        _
      $region20: #{mhg_forward.1} parent=11 // pred_fallthru
        _
    $region12: #{mhg_forward.1} parent=5 // pred_fallthru
      _
    %p140 = scmp.lt.s32.totalorder %s9, 2
    // Predicated region
    $region21: #{mhg_forward.1} parent=5 // pred_check
      %p141 = pneg %p140
    $region22: #{mhg_forward.1} parent=5 // pred_check_branch
      %143 = sbr.rel (%p141) target = $region24
    $region23: #{mhg_forward.1} parent=5 // pred_region
      // Predicated region
      $region25: #{mhg_forward.1} parent=23 // pred_check
        %p144 = pneg %p43
      $region26: #{mhg_forward.1} parent=23 // pred_check_branch
        %146 = sbr.rel (%p144) target = $region28
      $region27: #{mhg_forward.1} parent=23 // pred_region
        %s147 = smul.u32 2, %s17
        %p148 = scmp.lt.s32.totalorder %s16, 1
        %s149 = scalar_select %p148, %s16, 1
        %p150 = scmp.lt.s32.totalorder %s147, 1
        %s151 = scalar_select %p150, %s147, 1
        %s152 = smul.addr %s149, 8
        %s153 = sadd.s32 %s151, %s152
        %s154 = smul.addr %s153, 8
        %s155 = scalar_lea.vmem %s0, %s154
        %s156 = smul.u32 2, %s17
      $region28: #{mhg_forward.1} parent=23 // pred_fallthru
        _
    $region24: #{mhg_forward.1} parent=5 // pred_fallthru
      _
    %p157 = scmp.le.s32.totalorder 1, %s9
    %p158 = scmp.lt.s32.totalorder %s9, 3
    %p159 = pnand %p157, %p158
    %p160 = pneg %p159
    // Predicated region
    $region29: #{mhg_forward.1} parent=5 // pred_check
      _
    $region30: #{mhg_forward.1} parent=5 // pred_check_branch
      %162 = sbr.rel (%p159) target = $region32
    $region31: #{mhg_forward.1} parent=5 // pred_region
      %s163 = ssub.s32 %s9, 1
      %s164 = smul.u32 2, %s19
      %p165 = scmp.lt.s32.totalorder %s18, 1
      %s166 = scalar_select %p165, %s18, 1
      %p167 = scmp.lt.s32.totalorder %s164, 1
      %s168 = scalar_select %p167, %s164, 1
      %s169 = smul.addr %s166, 8
      %s170 = sadd.s32 %s168, %s169
      %s171 = smul.addr %s170, 8
      %s172 = scalar_lea.vmem %s0, %s171
      %p173 = pneg %p49
      %p174 = pneg %p46
      %p175 = pneg %p70
      %p176 = pneg %p67
      %p177 = pneg %p91
      %p178 = pneg %p88
      %p179 = pneg %p119
      %p180 = pneg %p116
      %s181 = smul.u32 2, %s19
      %p182 = scmp.lt.s32.totalorder %s18, 1
      %s183 = scalar_select %p182, %s18, 1
      %p184 = scmp.lt.s32.totalorder %s181, 1
      %s185 = scalar_select %p184, %s181, 1
      %s186 = smul.addr %s183, 8
      %s187 = sadd.s32 %s185, %s186
      %s188 = smul.addr %s187, 8
      %s189 = scalar_lea.vmem %s3, %s188
      %s190 = smul.u32 2, %s19
      %p191 = scmp.lt.s32.totalorder %s18, 1
      %s192 = scalar_select %p191, %s18, 1
      %p193 = scmp.lt.s32.totalorder %s190, 1
      %s194 = scalar_select %p193, %s190, 1
      %s195 = smul.addr %s192, 8
      %s196 = sadd.s32 %s194, %s195
      %s197 = smul.addr %s196, 8
      %s198 = scalar_lea.vmem %s0, %s197
      %s199 = smul.u32 2, %s19
      %s200 = smul.u32 2, %s19
      %p201 = scmp.lt.s32.totalorder %s18, 1
      %s202 = scalar_select %p201, %s18, 1
      %p203 = scmp.lt.s32.totalorder %s200, 1
      %s204 = scalar_select %p203, %s200, 1
      %s205 = smul.addr %s202, 8
      %s206 = sadd.s32 %s204, %s205
      %s207 = smul.addr %s206, 8
      %s208 = scalar_lea.vmem %s3, %s207
      %s209 = smul.u32 2, %s19
      %v211 = vld [vmem:[%s198] sm:$0xff]
      %v212 = vld [vmem:[%s198 + $0x8] sm:$0xff]
      %v213 = vld [vmem:[%s198 + $0x10] sm:$0xff]
      %v214 = vld [vmem:[%s198 + $0x18] sm:$0xff]
      %v215 = vld [vmem:[%s198 + $0x20] sm:$0xff]
      %v216 = vld [vmem:[%s198 + $0x28] sm:$0xff]
      %v217 = vld [vmem:[%s198 + $0x30] sm:$0xff]
      %v218 = vld [vmem:[%s198 + $0x38] sm:$0xff]
      %v219 = vld [vmem:[%s1] sm:$0xf]
      %v220 = vld [vmem:[%s1 + $0x4] sm:$0xf]
      %v221 = vld [vmem:[%s1 + $0x8] sm:$0xf]
      %v222 = vld [vmem:[%s1 + $0xc] sm:$0xf]
      %v223 = vld [vmem:[%s1 + $0x10] sm:$0xf]
      %v224 = vld [vmem:[%s1 + $0x14] sm:$0xf]
      %v225 = vld [vmem:[%s1 + $0x18] sm:$0xf]
      %v226 = vld [vmem:[%s1 + $0x1c] sm:$0xf]
      %v227 = vld [vmem:[%s1 + $0x20] sm:$0xf]
      %v228 = vld [vmem:[%s1 + $0x24] sm:$0xf]
      %v229 = vld [vmem:[%s1 + $0x28] sm:$0xf]
      %v230 = vld [vmem:[%s1 + $0x2c] sm:$0xf]
      %v231 = vld [vmem:[%s1 + $0x30] sm:$0xf]
      %v232 = vld [vmem:[%s1 + $0x34] sm:$0xf]
      %v233 = vld [vmem:[%s1 + $0x38] sm:$0xf]
      %v234 = vld [vmem:[%s1 + $0x3c] sm:$0xf]
      %v235 = vpack.c.bf16 %v213, %v211
      %v236 = vpack.c.bf16 %v214, %v212
      %v237 = vpack.c.bf16 %v217, %v215
      %v238 = vpack.c.bf16 %v218, %v216
      %v239 = vld [vmem:[%s2] sm:$0xff]
      %v240 = vld [vmem:[%s2 + $0x8] sm:$0xff]
      %v241 = vld [vmem:[%s2 + $0x10] sm:$0xff]
      %v242 = vld [vmem:[%s2 + $0x18] sm:$0xff]
      %v243 = vld [vmem:[%s2 + $0x20] sm:$0xff]
      %v244 = vld [vmem:[%s2 + $0x28] sm:$0xff]
      %v245 = vld [vmem:[%s2 + $0x30] sm:$0xff]
      %v246 = vld [vmem:[%s2 + $0x38] sm:$0xff]
      %v247 = vld [vmem:[%s2 + $0x40] sm:$0xff]
      %v248 = vld [vmem:[%s2 + $0x48] sm:$0xff]
      %v249 = vld [vmem:[%s2 + $0x50] sm:$0xff]
      %v250 = vld [vmem:[%s2 + $0x58] sm:$0xff]
      %v251 = vld [vmem:[%s2 + $0x60] sm:$0xff]
      %v252 = vld [vmem:[%s2 + $0x68] sm:$0xff]
      %v253 = vld [vmem:[%s2 + $0x70] sm:$0xff]
      %v254 = vld [vmem:[%s2 + $0x78] sm:$0xff]
      %256 = vset.pattern.permute.xlu0 0
      %257 = vperm.xlu0 %256, %v239
      %v258 = vpop.permute.xlu0 %257
      %261 = vset.pattern.permute.xlu0 0
      %262 = vperm.xlu0 %261, %v240
      %v263 = vpop.permute.xlu0 %262
      %266 = vset.pattern.permute.xlu0 0
      %267 = vperm.xlu0 %266, %v241
      %v268 = vpop.permute.xlu0 %267
      %271 = vset.pattern.permute.xlu0 0
      %272 = vperm.xlu0 %271, %v242
      %v273 = vpop.permute.xlu0 %272
      %276 = vset.pattern.permute.xlu0 0
      %277 = vperm.xlu0 %276, %v243
      %v278 = vpop.permute.xlu0 %277
      %281 = vset.pattern.permute.xlu0 0
      %282 = vperm.xlu0 %281, %v244
      %v283 = vpop.permute.xlu0 %282
      %286 = vset.pattern.permute.xlu0 0
      %287 = vperm.xlu0 %286, %v245
      %v288 = vpop.permute.xlu0 %287
      %291 = vset.pattern.permute.xlu0 0
      %292 = vperm.xlu0 %291, %v246
      %v293 = vpop.permute.xlu0 %292
      %296 = vset.pattern.permute.xlu0 0
      %297 = vperm.xlu0 %296, %v247
      %v298 = vpop.permute.xlu0 %297
      %301 = vset.pattern.permute.xlu0 0
      %302 = vperm.xlu0 %301, %v248
      %v303 = vpop.permute.xlu0 %302
      %306 = vset.pattern.permute.xlu0 0
      %307 = vperm.xlu0 %306, %v249
      %v308 = vpop.permute.xlu0 %307
      %311 = vset.pattern.permute.xlu0 0
      %312 = vperm.xlu0 %311, %v250
      %v313 = vpop.permute.xlu0 %312
      %316 = vset.pattern.permute.xlu0 0
      %317 = vperm.xlu0 %316, %v251
      %v318 = vpop.permute.xlu0 %317
      %321 = vset.pattern.permute.xlu0 0
      %322 = vperm.xlu0 %321, %v252
      %v323 = vpop.permute.xlu0 %322
      %326 = vset.pattern.permute.xlu0 0
      %327 = vperm.xlu0 %326, %v253
      %v328 = vpop.permute.xlu0 %327
      %331 = vset.pattern.permute.xlu0 0
      %332 = vperm.xlu0 %331, %v254
      %v333 = vpop.permute.xlu0 %332
      %v351 = vunpack.c.l.b16 %v219
      %v352 = vunpack.c.l.b16 %v220
      %v353 = vunpack.c.l.b16 %v221
      %v354 = vunpack.c.l.b16 %v222
      %v355 = vunpack.c.l.b16 %v223
      %v356 = vunpack.c.l.b16 %v224
      %v357 = vunpack.c.l.b16 %v225
      %v358 = vunpack.c.l.b16 %v226
      %v359 = vunpack.c.l.b16 %v227
      %v360 = vunpack.c.l.b16 %v228
      %v361 = vunpack.c.l.b16 %v229
      %v362 = vunpack.c.l.b16 %v230
      %v363 = vunpack.c.l.b16 %v231
      %v364 = vunpack.c.l.b16 %v232
      %v365 = vunpack.c.l.b16 %v233
      %v366 = vunpack.c.l.b16 %v234
      %v367 = vpack.c.b16 %v352, %v351
      %v368 = vpack.c.b16 %v354, %v353
      %v369 = vpack.c.b16 %v356, %v355
      %v370 = vpack.c.b16 %v358, %v357
      %v371 = vpack.c.b16 %v360, %v359
      %v372 = vpack.c.b16 %v362, %v361
      %v373 = vpack.c.b16 %v364, %v363
      %v374 = vpack.c.b16 %v366, %v365
      %vm375 = vcmask 261120
      %v377 = vsel %vm375, %v367, 0
      %v380 = vsel %vm375, %v368, 0
      %v383 = vsel %vm375, %v369, 0
      %v386 = vsel %vm375, %v370, 0
      %v389 = vsel %vm375, %v371, 0
      %v392 = vsel %vm375, %v372, 0
      %v395 = vsel %vm375, %v373, 0
      %v398 = vsel %vm375, %v374, 0
      %400 = vmatprep.subr.bf16.mxu0 0
      %401 = vmatpush1.bf16.msra.mxu0 0
      %402 = vmatprep.subr.bf16.mxu0 0
      %403 = vmatpush1.bf16.msra.mxu0 0
      %404 = vmatprep.subr.bf16.mxu0 0
      %405 = vmatpush1.bf16.msra.mxu0 0
      %406 = vmatprep.subr.bf16.mxu0 0
      %407 = vmatpush1.bf16.msra.mxu0 0
      %408 = vmatprep.subr.bf16.mxu0 0
      %409 = vmatpush1.bf16.msra.mxu0 0
      %410 = vmatprep.subr.bf16.mxu0 0
      %411 = vmatpush1.bf16.msra.mxu0 0
      %412 = vmatprep.subr.bf16.mxu0 %v238
      %413 = vmatpush1.bf16.msra.mxu0 %v237
      %414 = vmatprep.subr.bf16.mxu0 %v236
      %415 = vmatpush1.bf16.msra.mxu0 %v235
      %416 = vmatprep.subr.bf16.mxu0 0
      %417 = vmatpush2.bf16.msra.mxu0 0
      %418 = vmatprep.subr.bf16.mxu0 0
      %419 = vmatpush2.bf16.msra.mxu0 0
      %420 = vmatprep.subr.bf16.mxu0 0
      %421 = vmatpush2.bf16.msra.mxu0 0
      %422 = vmatprep.subr.bf16.mxu0 0
      %423 = vmatpush2.bf16.msra.mxu0 0
      %424 = vmatprep.subr.bf16.mxu0 0
      %425 = vmatpush2.bf16.msra.mxu0 0
      %426 = vmatprep.subr.bf16.mxu0 0
      %427 = vmatpush2.bf16.msra.mxu0 0
      %428 = vmatprep.subr.bf16.mxu0 0
      %429 = vmatpush2.bf16.msra.mxu0 0
      %430 = vmatprep.subr.bf16.mxu0 0
      %431 = vmatpush2.bf16.msra.mxu0 0
      %432 = vmatprep.mubr.bf16.mxu0 0
      %433 = vmatmul.mubr.bf16.gmra.mxu0 %v377
      %v434 = vpop.f32.mrf.mxu0
      %v435 = vadd.f32 %v258, %v434
      %v436 = vpop.f32.mrf.mxu0
      %v437 = vadd.f32 %v258, %v436
      %v438 = vpop.f32.mrf.mxu0
      %v439 = vadd.f32 %v263, %v438
      %v440 = vpop.f32.mrf.mxu0
      %v441 = vadd.f32 %v263, %v440
      %442 = vmatprep.mubr.bf16.mxu0 0
      %443 = vmatmul.mubr.bf16.gmra.mxu0 %v380
      %v444 = vpop.f32.mrf.mxu0
      %v445 = vadd.f32 %v268, %v444
      %v446 = vpop.f32.mrf.mxu0
      %v447 = vadd.f32 %v268, %v446
      %v448 = vpop.f32.mrf.mxu0
      %v449 = vadd.f32 %v273, %v448
      %v450 = vpop.f32.mrf.mxu0
      %v451 = vadd.f32 %v273, %v450
      %452 = vmatprep.mubr.bf16.mxu0 0
      %453 = vmatmul.mubr.bf16.gmra.mxu0 %v383
      %v454 = vpop.f32.mrf.mxu0
      %v455 = vadd.f32 %v278, %v454
      %v456 = vpop.f32.mrf.mxu0
      %v457 = vadd.f32 %v278, %v456
      %v458 = vpop.f32.mrf.mxu0
      %v459 = vadd.f32 %v283, %v458
      %v460 = vpop.f32.mrf.mxu0
      %v461 = vadd.f32 %v283, %v460
      %462 = vmatprep.mubr.bf16.mxu0 0
      %463 = vmatmul.mubr.bf16.gmra.mxu0 %v386
      %v464 = vpop.f32.mrf.mxu0
      %v465 = vadd.f32 %v288, %v464
      %v466 = vpop.f32.mrf.mxu0
      %v467 = vadd.f32 %v288, %v466
      %v468 = vpop.f32.mrf.mxu0
      %v469 = vadd.f32 %v293, %v468
      %v470 = vpop.f32.mrf.mxu0
      %v471 = vadd.f32 %v293, %v470
      %472 = vmatprep.mubr.bf16.mxu0 0
      %473 = vmatmul.mubr.bf16.gmra.mxu0 %v389
      %v474 = vpop.f32.mrf.mxu0
      %v475 = vadd.f32 %v298, %v474
      %v476 = vpop.f32.mrf.mxu0
      %v477 = vadd.f32 %v298, %v476
      %v478 = vpop.f32.mrf.mxu0
      %v479 = vadd.f32 %v303, %v478
      %v480 = vpop.f32.mrf.mxu0
      %v481 = vadd.f32 %v303, %v480
      %482 = vmatprep.mubr.bf16.mxu0 0
      %483 = vmatmul.mubr.bf16.gmra.mxu0 %v392
      %v484 = vpop.f32.mrf.mxu0
      %v485 = vadd.f32 %v308, %v484
      %v486 = vpop.f32.mrf.mxu0
      %v487 = vadd.f32 %v308, %v486
      %v488 = vpop.f32.mrf.mxu0
      %v489 = vadd.f32 %v313, %v488
      %v490 = vpop.f32.mrf.mxu0
      %v491 = vadd.f32 %v313, %v490
      %492 = vmatprep.mubr.bf16.mxu0 0
      %493 = vmatmul.mubr.bf16.gmra.mxu0 %v395
      %v494 = vpop.f32.mrf.mxu0
      %v495 = vadd.f32 %v318, %v494
      %v496 = vpop.f32.mrf.mxu0
      %v497 = vadd.f32 %v318, %v496
      %v498 = vpop.f32.mrf.mxu0
      %v499 = vadd.f32 %v323, %v498
      %v500 = vpop.f32.mrf.mxu0
      %v501 = vadd.f32 %v323, %v500
      %502 = vmatprep.mubr.bf16.mxu0 0
      %503 = vmatmul.mubr.bf16.gmra.mxu0 %v398
      %v504 = vpop.f32.mrf.mxu0
      %v505 = vadd.f32 %v328, %v504
      %v506 = vpop.f32.mrf.mxu0
      %v507 = vadd.f32 %v328, %v506
      %v508 = vpop.f32.mrf.mxu0
      %v509 = vadd.f32 %v333, %v508
      %v510 = vpop.f32.mrf.mxu0
      %v511 = vadd.f32 %v333, %v510
      %512 = vdwg.mxu0
      %v513 = vmul.f32 %v435, %v455
      %v514 = vmul.f32 %v437, %v457
      %v515 = vmul.f32 %v439, %v459
      %v516 = vmul.f32 %v441, %v461
      %v517 = vmul.f32 %v445, %v465
      %v518 = vmul.f32 %v447, %v467
      %v519 = vmul.f32 %v449, %v469
      %v520 = vmul.f32 %v451, %v471
      %v521 = vmul.f32 %v475, %v495
      %v522 = vmul.f32 %v477, %v497
      %v523 = vmul.f32 %v479, %v499
      %v524 = vmul.f32 %v481, %v501
      %v525 = vmul.f32 %v485, %v505
      %v526 = vmul.f32 %v487, %v507
      %v527 = vmul.f32 %v489, %v509
      %v528 = vmul.f32 %v491, %v511
      %v529 = vadd.f32 %v513, %v521
      %v530 = vadd.f32 %v514, %v522
      %v531 = vadd.f32 %v515, %v523
      %v532 = vadd.f32 %v516, %v524
      %v533 = vadd.f32 %v517, %v525
      %v534 = vadd.f32 %v518, %v526
      %v535 = vadd.f32 %v519, %v527
      %v536 = vadd.f32 %v520, %v528
      %537 = vst [vmem:[%s208] sm:$0xff] %v529
      %538 = vst [vmem:[%s208 + $0x8] sm:$0xff] %v530
      %539 = vst [vmem:[%s208 + $0x10] sm:$0xff] %v531
      %540 = vst [vmem:[%s208 + $0x18] sm:$0xff] %v532
      %541 = vst [vmem:[%s208 + $0x20] sm:$0xff] %v533
      %542 = vst [vmem:[%s208 + $0x28] sm:$0xff] %v534
      %543 = vst [vmem:[%s208 + $0x30] sm:$0xff] %v535
      %544 = vst [vmem:[%s208 + $0x38] sm:$0xff] %v536
      %s545 = smul.u32 2, %s19
      %p546 = scmp.lt.s32.totalorder %s18, 1
      %s547 = scalar_select %p546, %s18, 1
      %p548 = scmp.lt.s32.totalorder %s545, 1
      %s549 = scalar_select %p548, %s545, 1
      %s550 = smul.addr %s547, 8
      %s551 = sadd.s32 %s549, %s550
      %s552 = smul.addr %s551, 8
      %s553 = scalar_lea.vmem %s3, %s552
      // Predicated region
      $region33: #{mhg_forward.1} parent=31 // pred_check
        %p554 = pneg %p116
      $region34: #{mhg_forward.1} parent=31 // pred_check_branch
        %556 = sbr.rel (%p554) target = $region36
      $region35: #{mhg_forward.1} parent=31 // pred_region
        %s557 = smul.u32 2, %s19
      $region36: #{mhg_forward.1} parent=31 // pred_fallthru
        _
    $region32: #{mhg_forward.1} parent=5 // pred_fallthru
      _
    %p558 = scmp.le.s32.totalorder 2, %s9
    // Predicated region
    $region37: #{mhg_forward.1} parent=5 // pred_check
      %p559 = pneg %p558
    $region38: #{mhg_forward.1} parent=5 // pred_check_branch
      %561 = sbr.rel (%p559) target = $region40
    $region39: #{mhg_forward.1} parent=5 // pred_region
      %s562 = ssub.s32 %s9, 2
      // Predicated region
      $region41: #{mhg_forward.1} parent=39 // pred_check
        %p563 = pneg %p122
      $region42: #{mhg_forward.1} parent=39 // pred_check_branch
        %565 = sbr.rel (%p563) target = $region44
      $region43: #{mhg_forward.1} parent=39 // pred_region
        %s566 = smul.u32 2, %s21
        %p567 = scmp.lt.s32.totalorder %s20, 1
        %s568 = scalar_select %p567, %s20, 1
        %p569 = scmp.lt.s32.totalorder %s566, 1
        %s570 = scalar_select %p569, %s566, 1
        %s571 = smul.addr %s568, 8
        %s572 = sadd.s32 %s570, %s571
        %s573 = smul.addr %s572, 8
        %s574 = scalar_lea.vmem %s3, %s573
      $region44: #{mhg_forward.1} parent=39 // pred_fallthru
        _
    $region40: #{mhg_forward.1} parent=5 // pred_fallthru
      _
  $region6: #{mhg_forward.1} parent=0 // loop_footer
    %s13 = sadd.s32 1, %s9
  $region7: #{mhg_forward.1} parent=0 // loop_footer_branch
    %8 = sbr.rel target = $region3
  $region8: #{mhg_forward.1} parent=0 // loop_exit
    _

</llo_original>
